<compile_context>
chip_gen: v7x
topology: tpu7x:2x2x1
jax: 0.10.0
libtpu: 0.0.40
codegen_flags: <defaults>
</compile_context>

<pallas_src>
import numpy as np
import jax
import jax.numpy as jnp
from jax.experimental import pallas as pl
from jax.experimental.pallas import tpu as pltpu


def _round_up(a: int, b: int) -> int:
    return (a + b - 1) // b * b


def _drop_path_kernel(s_ref, x_ref, o_ref):
    # s_ref: (Rt, 1) per-row scale in x.dtype; x_ref / o_ref: (Rt, Lb) tile.
    o_ref[...] = x_ref[...] * s_ref[...]


def drop_path(x, drop_prob: float = 0.0, training: bool = False, *, key=None):
    """JAX/Pallas equivalent of the PyTorch drop_path function.

    x: (B, ...) array. Returns array of same shape/dtype.
    """
    if drop_prob == 0.0 or not training:
        return x
    if not (0.0 < drop_prob < 1.0):
        # drop_prob == 1.0 would divide by keep_prob == 0 (NaN for dropped
        # samples, same flaw as the torch impl) -- reject explicitly.
        raise ValueError(f"drop_prob must be in [0, 1), got {drop_prob}")
    assert key is not None, "need a PRNG key when training with drop_prob > 0"

    keep_prob = 1.0 - drop_prob
    orig_shape = x.shape
    B = x.shape[0]
    E = int(np.prod(x.shape[1:]))
    itemsize = jnp.dtype(x.dtype).itemsize
    sub = max(8, 32 // itemsize)  # native sublane packing: 8 f32 / 16 bf16 / 32 int8

    # Per-sample keep/scale factor, matching torch semantics:
    #   floor(keep_prob + U[0,1)) == 1  <=>  U >= drop_prob
    u = jax.random.uniform(key, (B,), dtype=jnp.float32)
    scale = ((u >= jnp.float32(drop_prob)).astype(jnp.float32)
             / jnp.float32(keep_prob)).astype(x.dtype)  # multiply in input dtype

    # --- layout: free reshape to an unpadded row-major (R, L) slab ----------
    # If E is 128-aligned, fold each sample into S = E // L rows of L lanes so
    # the sublane axis is dense even for tiny batch; otherwise one row/sample.
    if E % 128 == 0:
        L = next(c for c in (1024, 512, 256, 128) if E % c == 0)
        S = E // L
    else:
        L, S = E, 1
    R = B * S
    x2 = x.reshape(R, L)
    scale_rows = jnp.repeat(scale, S) if S > 1 else scale      # (R,) per-row scale
    scale2 = scale_rows.reshape(R, 1)

    # --- block sizing: ~4 MiB per activation buffer (pipeline = ~16 MiB) ----
    target_bytes = 4 << 20
    L_pad = _round_up(L, 128)              # VMEM lane padding of one row
    row_bytes = L_pad * itemsize

    if row_bytes * sub <= target_bytes:
        # Full-width rows -> every block is a contiguous HBM slab.
        Lb = L
        rows_budget = (target_bytes // row_bytes) // sub * sub   # multiple of sub
        Rt = R if R <= rows_budget else rows_budget
    else:
        # One (sublane-padded) row already blows the budget: tile lanes too.
        Rt = R if R <= sub else sub
        Rt_pad = _round_up(Rt, sub)
        Lb = max(128, (target_bytes // (Rt_pad * itemsize)) // 128 * 128)

    # v7x: guarantee >= 2 parallel grid steps when the tensor is big enough,
    # so both TensorCores get fed (irrelevant on 1-TC v5e/v6e).
    if (R * L * itemsize >= (256 << 10)
            and pl.cdiv(R, Rt) == 1 and pl.cdiv(L, Lb) == 1):
        if R >= 2 * sub:
            Rt = _round_up(pl.cdiv(R, 2), sub)
        elif L >= 256:
            Lb = _round_up(pl.cdiv(L, 2), 128)

    grid = (pl.cdiv(R, Rt), pl.cdiv(L, Lb))

    cost = pl.CostEstimate(
        flops=R * L,
        transcendentals=0,
        bytes_accessed=2 * R * L * itemsize + R * itemsize,
    )

    out = pl.pallas_call(
        _drop_path_kernel,
        out_shape=jax.ShapeDtypeStruct((R, L), x.dtype),
        grid=grid,
        in_specs=[
            pl.BlockSpec((Rt, 1), lambda r, c: (r, 0)),     # per-row scale
            pl.BlockSpec((Rt, Lb), lambda r, c: (r, c)),    # activation tile
        ],
        out_specs=pl.BlockSpec((Rt, Lb), lambda r, c: (r, c)),
        input_output_aliases={1: 0},  # donate activation buffer -> output
        compiler_params=pltpu.CompilerParams(
            dimension_semantics=("parallel", "parallel"),
            vmem_limit_bytes=32 * 1024 * 1024,
        ),
        cost_estimate=cost,
    )(scale2, x2)

    return out.reshape(orig_shape)


class DropPath:
    """Drop paths (Stochastic Depth) per sample."""

    def __init__(self, drop_prob=None):
        self.drop_prob = drop_prob if drop_prob is not None else 0.0
        self.training = True

    def __call__(self, x, key=None):
        return drop_path(x, self.drop_prob, self.training, key=key)


if __name__ == "__main__":
    key = jax.random.PRNGKey(0)
    kx, kmask = jax.random.split(key)

    def ref_drop_path(x, p, k):
        u = jax.random.uniform(k, (x.shape[0],), dtype=jnp.float32)
        m = ((u >= p).astype(jnp.float32) / (1.0 - p)).astype(x.dtype)
        return x * m.reshape((x.shape[0],) + (1,) * (x.ndim - 1))

    # 1) main small test: B=2, C=4, 16x16 (E = 1024, one lane-dense row/sample)
    x = jax.random.normal(kx, (2, 4, 16, 16), dtype=jnp.float32)
    ref = np.asarray(ref_drop_path(x, 0.3, kmask))
    module = DropPath(0.3)
    module.training = True
    out = jax.block_until_ready(module(x, key=kmask))
    np.testing.assert_allclose(np.asarray(out), ref, rtol=1e-6, atol=1e-6)

    # 2) non-128-aligned element count (E = 196) exercises the L = E fallback
    xb = jax.random.normal(kx, (3, 4, 7, 7), dtype=jnp.float32)
    refb = np.asarray(ref_drop_path(xb, 0.5, kmask))
    outb = jax.block_until_ready(drop_path(xb, 0.5, True, key=kmask))
    np.testing.assert_allclose(np.asarray(outb), refb, rtol=1e-6, atol=1e-6)

    # 3) larger sample: multi-row-per-sample fold, 2-step grid, ragged last block
    xc = jax.random.normal(kx, (3, 16, 132, 128), dtype=jnp.float32)  # E = 270336
    refc = np.asarray(ref_drop_path(xc, 0.3, kmask))
    outc = jax.block_until_ready(drop_path(xc, 0.3, True, key=kmask))
    np.testing.assert_allclose(np.asarray(outc), refc, rtol=1e-6, atol=1e-6)

    # 4) bf16 path (sublane packing = 16); multiply stays in input dtype
    xd = jax.random.normal(kx, (2, 4, 16, 16), dtype=jnp.bfloat16)
    refd = np.asarray(ref_drop_path(xd, 0.3, kmask).astype(jnp.float32))
    outd = jax.block_until_ready(drop_path(xd, 0.3, True, key=kmask))
    np.testing.assert_allclose(np.asarray(outd.astype(jnp.float32)), refd,
                               rtol=1e-2, atol=1e-2)

    # 5) eval / drop_prob == 0 fast path returns input unchanged
    module.training = False
    out_eval = jax.block_until_ready(module(x, key=kmask))
    np.testing.assert_allclose(np.asarray(out_eval), np.asarray(x))

    print("KERNEL_OK")
</pallas_src>

<mosaic_0001>
module attributes {stable_mosaic.version = 11 : i64} {
  func.func @_drop_path_kernel(%arg0: i32, %arg1: i32, %arg2: memref<2x1xf32, #tpu.memory_space<vmem>>, %arg3: memref<2x1024xf32, #tpu.memory_space<vmem>>, %arg4: memref<2x1024xf32, #tpu.memory_space<vmem>>) attributes {dimension_semantics = [#tpu.dimension_semantics<parallel>, #tpu.dimension_semantics<parallel>], iteration_bounds = array<i64: 1, 1>, scalar_prefetch = 0 : i64, scratch_operands = 0 : i64, tpu.core_type = #tpu.core_type<tc>, window_params = [{transform_indices = @transform_0, window_bounds = array<i64: 2, 1>}, {transform_indices = @transform_1, window_bounds = array<i64: 2, 1024>}, {transform_indices = @transform_2, window_bounds = array<i64: 2, 1024>}]} {
    %c0 = arith.constant 0 : index
    %c0_0 = arith.constant 0 : index
    %0 = vector.load %arg3[%c0, %c0_0] : memref<2x1024xf32, #tpu.memory_space<vmem>>, vector<2x1024xf32>
    %c0_1 = arith.constant 0 : index
    %c0_2 = arith.constant 0 : index
    %1 = vector.load %arg2[%c0_1, %c0_2] : memref<2x1xf32, #tpu.memory_space<vmem>>, vector<2x1xf32>
    %2 = vector.broadcast %1 : vector<2x1xf32> to vector<2x1024xf32>
    %3 = arith.mulf %0, %2 : vector<2x1024xf32>
    %c0_3 = arith.constant 0 : index
    %c0_4 = arith.constant 0 : index
    %4 = vector.load %arg4[%c0_3, %c0_4] : memref<2x1024xf32, #tpu.memory_space<vmem>>, vector<2x1024xf32>
    tpu.vector_store %arg4[%c0_3, %c0_4], %3 {strides = array<i32>} : memref<2x1024xf32, #tpu.memory_space<vmem>>, vector<2x1024xf32>,
    return
  }
  func.func @transform_0(%arg0: i32, %arg1: i32) -> (i32, i32) {
    %c0_i32 = arith.constant 0 : i32
    %c0_i32_0 = arith.constant 0 : i32
    return %arg0, %c0_i32 : i32, i32
  }
  func.func @transform_1(%arg0: i32, %arg1: i32) -> (i32, i32) {
    %c0_i32 = arith.constant 0 : i32
    return %arg0, %arg1 : i32, i32
  }
  func.func @transform_2(%arg0: i32, %arg1: i32) -> (i32, i32) {
    %c0_i32 = arith.constant 0 : i32
    return %arg0, %arg1 : i32, i32
  }
}

</mosaic_0001>

<llo_original>
// kernel: tpu_custom_call.1
$region0: #{tpu_custom_call.1}
  #allocation0 [shape = 'u32[]', space=smem, size = 0x4, offset = 0x4, fixed_abs, tag = 'smem constant byte address 0x4 - core index']
  #allocation1 [shape = 'u32[144,128]{1,0:T(1,128)}', space=vmem, size = 0x12000, scoped, tag = 'internal scratch']
  %s0 = inlined_call_operand.vmem [shape: f32[2,1], index: 0, kind: input, shape index: {}]
  %s1 = inlined_call_operand.hbm [shape: f32[2,1024], index: 1, kind: input, shape index: {}, may-alias: {1,2}]
  %s2 = inlined_call_operand.hbm [shape: f32[2,1024], index: 2, kind: output, shape index: {}, may-alias: {1,2}]
  %s3 = sld [smem:[#allocation0]]
  $region22: #{tpu_custom_call.1} parent=0
    _
  %s5 = ssub.s32 1, %s3
  %s6 = scalar_select 0, %s5, %s3
  $region1: #{tpu_custom_call.1} parent=0
    #allocation2 [shape = 'u8[8192]{0}', space=vmem, size = 0x2000, scoped, tag = 'input window, operand 1, single buffered']
    #allocation3 [shape = 's32[1]{0}', space=sflag, size = 0x4, scoped, tag = 'scoped memory for tpu_custom_call.1']
    #allocation4 [shape = 's32[1]{0}', space=sflag, size = 0x4, scoped, tag = 'scoped memory for tpu_custom_call.1']
    #allocation5 [shape = 'u8[8192]{0}', space=vmem, size = 0x2000, scoped, tag = 'output window, operand 0, single buffered']
    %7 = vsyncpa [#allocation3], 0
    %8 = vsyncpa [#allocation4], 0
    // Predicated region
    $region2: #{tpu_custom_call.1} parent=1 // pred_check
      _
    $region3: #{tpu_custom_call.1} parent=1 // pred_check_branch
      %10 = sbr.rel (0) target = $region5
    $region4: #{tpu_custom_call.1} parent=1 // pred_region
      _
    $region5: #{tpu_custom_call.1} parent=1 // pred_fallthru
      _
    // Predicated region
    $region6: #{tpu_custom_call.1} parent=1 // pred_check
      _
    $region7: #{tpu_custom_call.1} parent=1 // pred_check_branch
      %12 = sbr.rel (0) target = $region9
    $region8: #{tpu_custom_call.1} parent=1 // pred_region
      %s14 = ssub.s32 256, 256
      %15 = vsyncadd [#allocation3], %s14
      %s17 = sshll.u32 [#allocation2], 4
      %s18 = int_to_ptr.vmem [resolvable:$true] %s17
      %20 = dma.hbm_to_vmem [thread:$0]  %s1, 256, %s18, [#allocation3]
    $region9: #{tpu_custom_call.1} parent=1 // pred_fallthru
      _
    // Predicated region
    $region10: #{tpu_custom_call.1} parent=1 // pred_check
      _
    $region11: #{tpu_custom_call.1} parent=1 // pred_check_branch
      %22 = sbr.rel (0) target = $region13
    $region12: #{tpu_custom_call.1} parent=1 // pred_region
      %23 = dma.done [#allocation3], 256
    $region13: #{tpu_custom_call.1} parent=1 // pred_fallthru
      _
    %v24 = vld [vmem:[#allocation2] sm:$0xff]
    %v25 = vld [vmem:[#allocation2 + $0x8] sm:$0xff]
    %v26 = vld [vmem:[%s0] sm:$0x3]
    %28 = vset.pattern.permute.xlu0 0
    %29 = vperm.xlu0 %28, %v26
    %v30 = vpop.permute.xlu0 %29
    %v32 = vunpack.c.l.s4 269488144
    %v33 = vunpack.c.0.s8 %v32
    %v34 = vlaneseq
    %v35 = vshrl.u32 %v34, 7
    %v36 = vsub.s32 %v33, %v35
    %v37 = vrot.slane %v30, %v36
    %v39 = vmul.f32 %v24, %v37
    %v40 = vmul.f32 %v25, %v37
    %41 = vst [vmem:[#allocation5] sm:$0xff] %v39
    %42 = vst [vmem:[#allocation5 + $0x8] sm:$0xff] %v40
    // Predicated region
    $region14: #{tpu_custom_call.1} parent=1 // pred_check
      _
    $region15: #{tpu_custom_call.1} parent=1 // pred_check_branch
      %44 = sbr.rel (0) target = $region17
    $region16: #{tpu_custom_call.1} parent=1 // pred_region
      %s46 = ssub.s32 256, 256
      %47 = vsyncadd [#allocation4], %s46
      %s49 = sshll.u32 [#allocation5], 4
      %s50 = int_to_ptr.vmem [resolvable:$true] %s49
      %52 = dma.vmem_to_hbm [thread:$0]  %s50, 256, %s2, [#allocation4]
    $region17: #{tpu_custom_call.1} parent=1 // pred_fallthru
      _
    // Predicated region
    $region18: #{tpu_custom_call.1} parent=1 // pred_check
      _
    $region19: #{tpu_custom_call.1} parent=1 // pred_check_branch
      %54 = sbr.rel (0) target = $region21
    $region20: #{tpu_custom_call.1} parent=1 // pred_region
      %55 = dma.done [#allocation4], 256
    $region21: #{tpu_custom_call.1} parent=1 // pred_fallthru
      _
    %56 = vsyncpa [#allocation3], 1
    %57 = vsyncpa [#allocation4], 1

</llo_original>
